<compile_context>
chip_gen: v5e
topology: v5e:2x2
jax: 0.10.0
libtpu: 0.0.40
codegen_flags: <defaults>
</compile_context>

<pallas_src>
import functools

import jax
import jax.numpy as jnp
from jax.experimental import pallas as pl
from jax.experimental.pallas import tpu as pltpu

_SUBLANE = 8


def _mlp_kernel(x_ref, w1_ref, b1_ref, w2_ref, b2_ref, w3_ref, o_ref):
    # One batch tile per grid step; weights/biases stay resident across steps.
    x = x_ref[...]
    # fc1 + ReLU (accumulation and all elementwise math stay f32; safe on v5e VPU)
    z1 = jnp.dot(x, w1_ref[...], preferred_element_type=jnp.float32) + b1_ref[...]
    x1 = jnp.maximum(z1, 0.0)
    # fc2 + ReLU (re-cast to weight dtype only for the MXU operands)
    z2 = (
        jnp.dot(x1.astype(w2_ref.dtype), w2_ref[...],
                preferred_element_type=jnp.float32)
        + b2_ref[...]
    )
    x2 = jnp.maximum(z2, 0.0)
    # fc3 (no bias) -> true-width output tile (no lane padding, no 8x writeback)
    o_ref[...] = jnp.dot(
        x2.astype(w3_ref.dtype), w3_ref[...], preferred_element_type=jnp.float32
    ).astype(o_ref.dtype)


def prepare_params(w1, b1, w2, b2, w3, *, use_bf16=False):
    """One-time parameter prep, hoisted out of the forward call.

    Takes PyTorch-layout weights ([out, in]) and biases ([out]); returns
    kernel-layout params ([in, out] weights, [1, out] f32 biases).  No K or N
    padding: out_dims < 128 is fine (block dim equals the full array dim) and
    zero-padding K only adds MXU work.
    """
    wdt = jnp.bfloat16 if use_bf16 else jnp.float32
    params = (
        w1.T.astype(wdt),
        b1[None, :].astype(jnp.float32),
        w2.T.astype(wdt),
        b2[None, :].astype(jnp.float32),
        w3.T.astype(wdt),
    )
    return params, int(w3.shape[0])


def _choose_tm(batch, tm_max):
    """Divisor-aware, sublane-aligned batch tile.

    Minimizes padding (pad < 8 rows per step) and keeps >= 2 grid steps when
    the batch is big enough, so v7x's two TensorCores both get work.
    """
    tm_max = max(_SUBLANE, int(tm_max))
    steps = max(1, pl.cdiv(batch, tm_max))
    if steps == 1 and batch > _SUBLANE:
        steps = 2
    tm = pl.cdiv(batch, steps)
    return pl.cdiv(tm, _SUBLANE) * _SUBLANE


def two_layer_fc_forward(x, params, out_dims, *, tm=1024):
    """x: [B, input_dims] f32; params from prepare_params(); returns [B, out_dims] f32."""
    w1_t, b1_2d, w2_t, b2_2d, w3_t = params
    B, in_dims = x.shape

    if w1_t.dtype == jnp.bfloat16:
        # bf16 matmul-operand path (v6e/v7x lever): halves the dominant x HBM
        # stream and hits the MXU's native bf16 rate; accumulation stays f32.
        x = x.astype(jnp.bfloat16)

    tm = _choose_tm(B, tm)
    B_pad = pl.cdiv(B, tm) * tm
    if B_pad != B:
        x = jnp.pad(x, ((0, B_pad - B), (0, 0)))

    # Guard the "all weights resident in VMEM" scheme (v7x: 32 MiB scoped).
    resident_bytes = sum(
        int(a.size) * a.dtype.itemsize for a in (w1_t, b1_2d, w2_t, b2_2d, w3_t)
    )
    stream_bytes = 2 * (tm * in_dims * x.dtype.itemsize + tm * out_dims * 4)
    assert resident_bytes + stream_bytes < 24 * 1024 * 1024, (
        "resident-weight scheme exceeds VMEM budget; tile the N/K dims"
    )  # TODO(synk): add an N/K-tiled grid variant for large hidden dims.

    def resident(shape):
        # Whole array, same block index every grid step -> stays in VMEM.
        return pl.BlockSpec(shape, lambda i: (0,) * len(shape))

    out = pl.pallas_call(
        _mlp_kernel,
        out_shape=jax.ShapeDtypeStruct((B_pad, out_dims), jnp.float32),
        grid=(B_pad // tm,),
        in_specs=[
            pl.BlockSpec((tm, in_dims), lambda i: (i, 0)),  # x streamed over batch
            resident(w1_t.shape),
            resident(b1_2d.shape),
            resident(w2_t.shape),
            resident(b2_2d.shape),
            resident(w3_t.shape),
        ],
        # True (unpadded) output width: legal because it equals the full array
        # dim; a masked vst beats 8x padded HBM write traffic + a slice pass.
        out_specs=pl.BlockSpec((tm, out_dims), lambda i: (i, 0)),
        compiler_params=pltpu.CompilerParams(dimension_semantics=("parallel",)),
    )(x, w1_t, b1_2d, w2_t, b2_2d, w3_t)

    return out[:B] if B_pad != B else out


def _init_linear(key, out_dim, in_dim, bias=True):
    # Deterministic init mimicking PyTorch nn.Linear default (+/- 1/sqrt(fan_in)).
    kw, kb = jax.random.split(key)
    bound = 1.0 / jnp.sqrt(jnp.float32(in_dim))
    w = jax.random.uniform(kw, (out_dim, in_dim), jnp.float32, -bound, bound)
    b = (
        jax.random.uniform(kb, (out_dim,), jnp.float32, -bound, bound)
        if bias
        else None
    )
    return w, b


if __name__ == "__main__":
    # Module config: input_dims=32, h1_dims=64, h2_dims=64, output_dims=16, batch=8
    batch, input_dims, h1_dims, h2_dims, output_dims = 8, 32, 64, 64, 16

    key = jax.random.PRNGKey(0)
    kx, k1, k2, k3 = jax.random.split(key, 4)

    x = jax.random.normal(kx, (batch, input_dims), jnp.float32)
    w1, b1 = _init_linear(k1, h1_dims, input_dims, bias=True)
    w2, b2 = _init_linear(k2, h2_dims, h1_dims, bias=True)
    w3, _ = _init_linear(k3, output_dims, h2_dims, bias=False)

    # One-time parameter prep (transposes / bias reshape hoisted); f32 default
    # keeps the tight reference check.  Set use_bf16=True on v6e/v7x for
    # throughput with a looser tolerance.
    params, out_dims = prepare_params(w1, b1, w2, b2, w3, use_bf16=False)
    fwd = jax.jit(functools.partial(two_layer_fc_forward, out_dims=out_dims))

    out = jax.block_until_ready(fwd(x, params))

    # Pure-JAX reference of the forward semantics (nn.Linear: y = x @ W.T + b).
    x1_ref = jnp.maximum(x @ w1.T + b1, 0.0)
    x2_ref = jnp.maximum(x1_ref @ w2.T + b2, 0.0)
    ref = x2_ref @ w3.T
    assert out.shape == (batch, output_dims)
    assert jnp.allclose(out, ref, atol=1e-5, rtol=1e-5)

    print("KERNEL_OK")
</pallas_src>

<mosaic_0001>
module attributes {stable_mosaic.version = 11 : i64} {
  func.func @_mlp_kernel(%arg0: i32, %arg1: memref<8x32xf32, #tpu.memory_space<vmem>>, %arg2: memref<32x64xf32, #tpu.memory_space<vmem>>, %arg3: memref<1x64xf32, #tpu.memory_space<vmem>>, %arg4: memref<64x64xf32, #tpu.memory_space<vmem>>, %arg5: memref<1x64xf32, #tpu.memory_space<vmem>>, %arg6: memref<64x16xf32, #tpu.memory_space<vmem>>, %arg7: memref<8x16xf32, #tpu.memory_space<vmem>>) attributes {dimension_semantics = [#tpu.dimension_semantics<parallel>], iteration_bounds = array<i64: 1>, scalar_prefetch = 0 : i64, scratch_operands = 0 : i64, tpu.core_type = #tpu.core_type<tc>, window_params = [{transform_indices = @transform_0, window_bounds = array<i64: 8, 32>}, {pipeline_mode = #tpu.pipeline_mode<synchronous>, transform_indices = @transform_1, window_bounds = array<i64: 32, 64>}, {pipeline_mode = #tpu.pipeline_mode<synchronous>, transform_indices = @transform_2, window_bounds = array<i64: 1, 64>}, {pipeline_mode = #tpu.pipeline_mode<synchronous>, transform_indices = @transform_3, window_bounds = array<i64: 64, 64>}, {pipeline_mode = #tpu.pipeline_mode<synchronous>, transform_indices = @transform_4, window_bounds = array<i64: 1, 64>}, {pipeline_mode = #tpu.pipeline_mode<synchronous>, transform_indices = @transform_5, window_bounds = array<i64: 64, 16>}, {transform_indices = @transform_6, window_bounds = array<i64: 8, 16>}]} {
    %c0 = arith.constant 0 : index
    %c0_0 = arith.constant 0 : index
    %0 = vector.load %arg1[%c0, %c0_0] : memref<8x32xf32, #tpu.memory_space<vmem>>, vector<8x32xf32>
    %c0_1 = arith.constant 0 : index
    %c0_2 = arith.constant 0 : index
    %1 = vector.load %arg2[%c0_1, %c0_2] : memref<32x64xf32, #tpu.memory_space<vmem>>, vector<32x64xf32>
    %cst = arith.constant dense<0.000000e+00> : vector<8x64xf32>
    %2 = tpu.matmul %0, %1, %cst {dimension_numbers = #tpu.dot_dimension_numbers<[1], [0], [0], [1], [0, 0, 1, 1], [], []>} : vector<8x32xf32>, vector<32x64xf32>, vector<8x64xf32> -> vector<8x64xf32>
    %c0_3 = arith.constant 0 : index
    %c0_4 = arith.constant 0 : index
    %3 = vector.load %arg3[%c0_3, %c0_4] : memref<1x64xf32, #tpu.memory_space<vmem>>, vector<1x64xf32>
    %4 = vector.broadcast %3 : vector<1x64xf32> to vector<8x64xf32>
    %5 = arith.addf %2, %4 : vector<8x64xf32>
    %cst_5 = arith.constant 0.000000e+00 : f32
    %6 = vector.broadcast %cst_5 : f32 to vector<8x64xf32>
    %7 = arith.maximumf %5, %6 : vector<8x64xf32>
    %c0_6 = arith.constant 0 : index
    %c0_7 = arith.constant 0 : index
    %8 = vector.load %arg4[%c0_6, %c0_7] : memref<64x64xf32, #tpu.memory_space<vmem>>, vector<64x64xf32>
    %cst_8 = arith.constant dense<0.000000e+00> : vector<8x64xf32>
    %9 = tpu.matmul %7, %8, %cst_8 {dimension_numbers = #tpu.dot_dimension_numbers<[1], [0], [0], [1], [0, 0, 1, 1], [], []>} : vector<8x64xf32>, vector<64x64xf32>, vector<8x64xf32> -> vector<8x64xf32>
    %c0_9 = arith.constant 0 : index
    %c0_10 = arith.constant 0 : index
    %10 = vector.load %arg5[%c0_9, %c0_10] : memref<1x64xf32, #tpu.memory_space<vmem>>, vector<1x64xf32>
    %11 = vector.broadcast %10 : vector<1x64xf32> to vector<8x64xf32>
    %12 = arith.addf %9, %11 : vector<8x64xf32>
    %cst_11 = arith.constant 0.000000e+00 : f32
    %13 = vector.broadcast %cst_11 : f32 to vector<8x64xf32>
    %14 = arith.maximumf %12, %13 : vector<8x64xf32>
    %c0_12 = arith.constant 0 : index
    %c0_13 = arith.constant 0 : index
    %15 = vector.load %arg6[%c0_12, %c0_13] : memref<64x16xf32, #tpu.memory_space<vmem>>, vector<64x16xf32>
    %cst_14 = arith.constant dense<0.000000e+00> : vector<8x16xf32>
    %16 = tpu.matmul %14, %15, %cst_14 {dimension_numbers = #tpu.dot_dimension_numbers<[1], [0], [0], [1], [0, 0, 1, 1], [], []>} : vector<8x64xf32>, vector<64x16xf32>, vector<8x16xf32> -> vector<8x16xf32>
    %c0_15 = arith.constant 0 : index
    %c0_16 = arith.constant 0 : index
    %17 = vector.load %arg7[%c0_15, %c0_16] : memref<8x16xf32, #tpu.memory_space<vmem>>, vector<8x16xf32>
    tpu.vector_store %arg7[%c0_15, %c0_16], %16 {strides = array<i32>} : memref<8x16xf32, #tpu.memory_space<vmem>>, vector<8x16xf32>,
    return
  }
  func.func @transform_0(%arg0: i32) -> (i32, i32) {
    %c0_i32 = arith.constant 0 : i32
    %c0_i32_0 = arith.constant 0 : i32
    return %arg0, %c0_i32 : i32, i32
  }
  func.func @transform_1(%arg0: i32) -> (i32, i32) {
    %c0_i32 = arith.constant 0 : i32
    %c0_i32_0 = arith.constant 0 : i32
    %c0_i32_1 = arith.constant 0 : i32
    return %c0_i32, %c0_i32_0 : i32, i32
  }
  func.func @transform_2(%arg0: i32) -> (i32, i32) {
    %c0_i32 = arith.constant 0 : i32
    %c0_i32_0 = arith.constant 0 : i32
    %c0_i32_1 = arith.constant 0 : i32
    return %c0_i32, %c0_i32_0 : i32, i32
  }
  func.func @transform_3(%arg0: i32) -> (i32, i32) {
    %c0_i32 = arith.constant 0 : i32
    %c0_i32_0 = arith.constant 0 : i32
    %c0_i32_1 = arith.constant 0 : i32
    return %c0_i32, %c0_i32_0 : i32, i32
  }
  func.func @transform_4(%arg0: i32) -> (i32, i32) {
    %c0_i32 = arith.constant 0 : i32
    %c0_i32_0 = arith.constant 0 : i32
    %c0_i32_1 = arith.constant 0 : i32
    return %c0_i32, %c0_i32_0 : i32, i32
  }
  func.func @transform_5(%arg0: i32) -> (i32, i32) {
    %c0_i32 = arith.constant 0 : i32
    %c0_i32_0 = arith.constant 0 : i32
    %c0_i32_1 = arith.constant 0 : i32
    return %c0_i32, %c0_i32_0 : i32, i32
  }
  func.func @transform_6(%arg0: i32) -> (i32, i32) {
    %c0_i32 = arith.constant 0 : i32
    %c0_i32_0 = arith.constant 0 : i32
    return %arg0, %c0_i32 : i32, i32
  }
}

</mosaic_0001>

<llo_original>
// kernel: two_layer_fc_forward.1
$region0: #{two_layer_fc_forward.1}
  #allocation0 [shape = 'u32[]', space=smem, size = 0x4, offset = 0x4, fixed_abs, tag = 'smem constant byte address 0x4 - core index']
  #allocation1 [shape = 'u32[72,128]{1,0:T(1,128)}', space=vmem, size = 0x9000, scoped, tag = 'internal scratch']
  %s0 = inlined_call_operand.vmem [shape: f32[8,32], index: 0, kind: input, shape index: {}]
  %s1 = inlined_call_operand.hbm [shape: f32[32,64], index: 1, kind: input, shape index: {}]
  %s2 = inlined_call_operand.vmem [shape: f32[1,64], index: 2, kind: input, shape index: {}]
  %s3 = inlined_call_operand.vmem [shape: f32[64,64], index: 3, kind: input, shape index: {}]
  %s4 = inlined_call_operand.vmem [shape: f32[1,64], index: 4, kind: input, shape index: {}]
  %s5 = inlined_call_operand.vmem [shape: f32[64,16], index: 5, kind: input, shape index: {}]
  %s6 = inlined_call_operand.hbm [shape: f32[8,16], index: 6, kind: output, shape index: {}]
  %s7 = sld [smem:[#allocation0]]
  $region38: #{two_layer_fc_forward.1} parent=0
    _
  %s9 = ssub.s32 1, %s7
  %s10 = scalar_select 0, %s9, %s7
  $region1: #{two_layer_fc_forward.1} parent=0
    #allocation2 [shape = 'u8[16384]{0}', space=vmem, size = 0x4000, scoped, tag = 'input window, operand 1, single buffered']
    #allocation3 [shape = 's32[1]{0}', space=sflag, size = 0x4, scoped, tag = 'scoped memory for two_layer_fc_forward.1']
    #allocation4 [shape = 's32[1]{0}', space=sflag, size = 0x4, scoped, tag = 'scoped memory for two_layer_fc_forward.1']
    #allocation5 [shape = 'u8[4096]{0}', space=vmem, size = 0x1000, scoped, tag = 'output window, operand 0, single buffered']
    %11 = vsyncpa [#allocation3], 0
    %12 = vsyncpa [#allocation4], 0
    // Predicated region
    $region2: #{two_layer_fc_forward.1} parent=1 // pred_check
      _
    $region3: #{two_layer_fc_forward.1} parent=1 // pred_check_branch
      %14 = sbr.rel (0) target = $region5
    $region4: #{two_layer_fc_forward.1} parent=1 // pred_region
      _
    $region5: #{two_layer_fc_forward.1} parent=1 // pred_fallthru
      _
    // Predicated region
    $region6: #{two_layer_fc_forward.1} parent=1 // pred_check
      _
    $region7: #{two_layer_fc_forward.1} parent=1 // pred_check_branch
      %16 = sbr.rel (0) target = $region9
    $region8: #{two_layer_fc_forward.1} parent=1 // pred_region
      %18 = vsyncadd [#allocation3], 0
      %s19 = sshll.u32 %s1, 4
      %s20 = int_to_ptr.hbm [resolvable:$true] %s19
      %s21 = sshll.u32 [#allocation2], 4
      %s22 = int_to_ptr.vmem [resolvable:$true] %s21
      %27 = dma.hbm_to_vmem [thread:$0]  %s20, 512, %s22, [#allocation3], 128, 128, 8
    $region9: #{two_layer_fc_forward.1} parent=1 // pred_fallthru
      _
    // Predicated region
    $region10: #{two_layer_fc_forward.1} parent=1 // pred_check
      _
    $region11: #{two_layer_fc_forward.1} parent=1 // pred_check_branch
      %29 = sbr.rel (0) target = $region13
    $region12: #{two_layer_fc_forward.1} parent=1 // pred_region
      _
    $region13: #{two_layer_fc_forward.1} parent=1 // pred_fallthru
      _
    // Predicated region
    $region14: #{two_layer_fc_forward.1} parent=1 // pred_check
      _
    $region15: #{two_layer_fc_forward.1} parent=1 // pred_check_branch
      %31 = sbr.rel (0) target = $region17
    $region16: #{two_layer_fc_forward.1} parent=1 // pred_region
      _
    $region17: #{two_layer_fc_forward.1} parent=1 // pred_fallthru
      _
    // Predicated region
    $region18: #{two_layer_fc_forward.1} parent=1 // pred_check
      _
    $region19: #{two_layer_fc_forward.1} parent=1 // pred_check_branch
      %33 = sbr.rel (0) target = $region21
    $region20: #{two_layer_fc_forward.1} parent=1 // pred_region
      _
    $region21: #{two_layer_fc_forward.1} parent=1 // pred_fallthru
      _
    // Predicated region
    $region22: #{two_layer_fc_forward.1} parent=1 // pred_check
      _
    $region23: #{two_layer_fc_forward.1} parent=1 // pred_check_branch
      %35 = sbr.rel (0) target = $region25
    $region24: #{two_layer_fc_forward.1} parent=1 // pred_region
      _
    $region25: #{two_layer_fc_forward.1} parent=1 // pred_fallthru
      _
    // Predicated region
    $region26: #{two_layer_fc_forward.1} parent=1 // pred_check
      _
    $region27: #{two_layer_fc_forward.1} parent=1 // pred_check_branch
      %37 = sbr.rel (0) target = $region29
    $region28: #{two_layer_fc_forward.1} parent=1 // pred_region
      %39 = dma.done [#allocation3], 512
    $region29: #{two_layer_fc_forward.1} parent=1 // pred_fallthru
      _
    %v40 = vld [vmem:[%s0] sm:$0xff]
    %v41 = vld [vmem:[#allocation2] sm:$0xff]
    %v42 = vld [vmem:[#allocation2 + $0x8] sm:$0xff]
    %v43 = vld [vmem:[#allocation2 + $0x10] sm:$0xff]
    %v44 = vld [vmem:[#allocation2 + $0x18] sm:$0xff]
    %v45 = vld [vmem:[%s2] sm:$0x1]
    %v47 = vperm.slane %v45, 0
    %vm49 = vcmask 261120
    %v51 = vsel %vm49, %v40, 0
    %53 = vmatpush.msra.mxu0 0.0
    %54 = vmatpush.msra.mxu0 0.0
    %55 = vmatpush.msra.mxu0 0.0
    %56 = vmatpush.msra.mxu0 0.0
    %57 = vmatpush.msra.mxu0 0.0
    %58 = vmatpush.msra.mxu0 0.0
    %59 = vmatpush.msra.mxu0 0.0
    %60 = vmatpush.msra.mxu0 0.0
    %61 = vmatpush.msra.mxu0 0.0
    %62 = vmatpush.msra.mxu0 0.0
    %63 = vmatpush.msra.mxu0 0.0
    %64 = vmatpush.msra.mxu0 0.0
    %65 = vmatpush.msra.mxu0 %v44
    %66 = vmatpush.msra.mxu0 %v43
    %67 = vmatpush.msra.mxu0 %v42
    %68 = vmatpush.msra.mxu0 %v41
    %69 = vmatmul.f32.gmra.mxu0 %v51
    %v70 = vpop.f32.mrf.mxu0
    %v71 = vadd.f32 %v47, %v70
    %72 = vdwg.mxu0
    %v73 = vmax.f32 %v71, 0.0
    %v74 = vld [vmem:[%s3] sm:$0xff]
    %v75 = vld [vmem:[%s3 + $0x8] sm:$0xff]
    %v76 = vld [vmem:[%s3 + $0x10] sm:$0xff]
    %v77 = vld [vmem:[%s3 + $0x18] sm:$0xff]
    %v78 = vld [vmem:[%s3 + $0x20] sm:$0xff]
    %v79 = vld [vmem:[%s3 + $0x28] sm:$0xff]
    %v80 = vld [vmem:[%s3 + $0x30] sm:$0xff]
    %v81 = vld [vmem:[%s3 + $0x38] sm:$0xff]
    %v82 = vld [vmem:[%s4] sm:$0x1]
    %v84 = vperm.slane %v82, 0
    %vm86 = vcmask 523264
    %v88 = vsel %vm86, %v73, 0
    %90 = vmatpush.msra.mxu0 0.0
    %91 = vmatpush.msra.mxu0 0.0
    %92 = vmatpush.msra.mxu0 0.0
    %93 = vmatpush.msra.mxu0 0.0
    %94 = vmatpush.msra.mxu0 0.0
    %95 = vmatpush.msra.mxu0 0.0
    %96 = vmatpush.msra.mxu0 0.0
    %97 = vmatpush.msra.mxu0 0.0
    %98 = vmatpush.msra.mxu0 %v81
    %99 = vmatpush.msra.mxu0 %v80
    %100 = vmatpush.msra.mxu0 %v79
    %101 = vmatpush.msra.mxu0 %v78
    %102 = vmatpush.msra.mxu0 %v77
    %103 = vmatpush.msra.mxu0 %v76
    %104 = vmatpush.msra.mxu0 %v75
    %105 = vmatpush.msra.mxu0 %v74
    %106 = vmatmul.f32.gmra.mxu0 %v88
    %v107 = vpop.f32.mrf.mxu0
    %v108 = vadd.f32 %v84, %v107
    %109 = vdwg.mxu0
    %v110 = vmax.f32 %v108, 0.0
    %v111 = vld [vmem:[%s5] sm:$0xff]
    %v112 = vld [vmem:[%s5 + $0x8] sm:$0xff]
    %v113 = vld [vmem:[%s5 + $0x10] sm:$0xff]
    %v114 = vld [vmem:[%s5 + $0x18] sm:$0xff]
    %v115 = vld [vmem:[%s5 + $0x20] sm:$0xff]
    %v116 = vld [vmem:[%s5 + $0x28] sm:$0xff]
    %v117 = vld [vmem:[%s5 + $0x30] sm:$0xff]
    %v118 = vld [vmem:[%s5 + $0x38] sm:$0xff]
    %v120 = vsel %vm86, %v110, 0
    %122 = vmatpush.msra.mxu0 0.0
    %123 = vmatpush.msra.mxu0 0.0
    %124 = vmatpush.msra.mxu0 0.0
    %125 = vmatpush.msra.mxu0 0.0
    %126 = vmatpush.msra.mxu0 0.0
    %127 = vmatpush.msra.mxu0 0.0
    %128 = vmatpush.msra.mxu0 0.0
    %129 = vmatpush.msra.mxu0 0.0
    %130 = vmatpush.msra.mxu0 %v118
    %131 = vmatpush.msra.mxu0 %v117
    %132 = vmatpush.msra.mxu0 %v116
    %133 = vmatpush.msra.mxu0 %v115
    %134 = vmatpush.msra.mxu0 %v114
    %135 = vmatpush.msra.mxu0 %v113
    %136 = vmatpush.msra.mxu0 %v112
    %137 = vmatpush.msra.mxu0 %v111
    %138 = vmatmul.f32.gmra.mxu0 %v120
    %v139 = vpop.f32.mrf.mxu0
    %v140 = vadd.f32 0.0, %v139
    %141 = vdwg.mxu0
    %vm142 = vcmask 130048
    %143 = vst.msk [vmem:[#allocation5] sm:$0xff] %vm142, %v140
    // Predicated region
    $region30: #{two_layer_fc_forward.1} parent=1 // pred_check
      _
    $region31: #{two_layer_fc_forward.1} parent=1 // pred_check_branch
      %145 = sbr.rel (0) target = $region33
    $region32: #{two_layer_fc_forward.1} parent=1 // pred_region
      %147 = vsyncadd [#allocation4], 0
      %s149 = sshll.u32 [#allocation5], 4
      %s150 = int_to_ptr.vmem [resolvable:$true] %s149
      %s151 = sshll.u32 %s6, 4
      %s152 = int_to_ptr.hbm [resolvable:$true] %s151
      %154 = dma.vmem_to_hbm [thread:$0]  %s150, 128, %s152, [#allocation4]
    $region33: #{two_layer_fc_forward.1} parent=1 // pred_fallthru
      _
    // Predicated region
    $region34: #{two_layer_fc_forward.1} parent=1 // pred_check
      _
    $region35: #{two_layer_fc_forward.1} parent=1 // pred_check_branch
      %156 = sbr.rel (0) target = $region37
    $region36: #{two_layer_fc_forward.1} parent=1 // pred_region
      %158 = dma.done [#allocation4], 128
    $region37: #{two_layer_fc_forward.1} parent=1 // pred_fallthru
      _
    %159 = vsyncpa [#allocation3], 1
    %160 = vsyncpa [#allocation4], 1

</llo_original>
